<compile_context>
chip_gen: v7x
topology: tpu7x:2x2x1
jax: 0.10.0
libtpu: 0.0.40
codegen_flags: <defaults>
</compile_context>

<pallas_src>
import functools

import jax
import jax.numpy as jnp
from jax import lax
from jax.experimental import pallas as pl
from jax.experimental.pallas import tpu as pltpu


def attention_kernel(x_ref, gamma_ref, beta_ref, wqkv_ref, wout_ref, bout_ref,
                     o_ref, *, heads, dim_head, eps):
    inner = heads * dim_head

    x = x_ref[...]                      # (N, D) f32 (batch dim squeezed)
    gamma = gamma_ref[...]              # (1, D) f32
    beta = beta_ref[...]                # (1, D) f32

    # ---- LayerNorm over the embedding dim, f32 elementwise ----
    mu = jnp.mean(x, axis=-1, keepdims=True)
    xc = x - mu
    var = jnp.mean(xc * xc, axis=-1, keepdims=True)
    xn = xc * lax.rsqrt(var + eps) * gamma + beta             # (N, D) f32
    xn_bf = xn.astype(jnp.bfloat16)

    # ---- Fused QKV projection: one lane-dense (N, D) @ (D, 3*inner) matmul.
    # The softmax scale is pre-folded into the Q columns of Wqkv on the host.
    # Single bf16 cast at the producer: every consumer below is an MXU operand.
    qkv = jnp.dot(xn_bf, wqkv_ref[...],
                  preferred_element_type=jnp.float32).astype(jnp.bfloat16)
    # qkv: (N, 3*inner) bf16, Q part already scaled by dim_head**-0.5.

    # ---- Per-head views (H, N, d): static lane slices + leading-dim stack
    # (rearrange 'n (h d) -> h n d' without an in-kernel minor-dim transpose).
    def head_stack(base):
        return jnp.stack(
            [qkv[:, base + h * dim_head: base + (h + 1) * dim_head]
             for h in range(heads)], axis=0)

    q3 = head_stack(0)                  # (H, N, d) bf16 (pre-scaled)
    k3 = head_stack(inner)              # (H, N, d) bf16
    v3 = head_stack(2 * inner)          # (H, N, d) bf16

    # ---- Scores: contract dim_head, batch over heads (no explicit k.T) ----
    dn_qk = (((2,), (2,)), ((0,), (0,)))
    s = lax.dot_general(q3, k3, dn_qk, preferred_element_type=jnp.float32)
    # s: (H, N, N) f32, scale already included.

    # ---- Numerically-stable softmax in f32; normalization deferred ----
    m = jnp.max(s, axis=-1, keepdims=True)                     # (H, N, 1)
    e = jnp.exp(s - m)                                         # (H, N, N) f32
    denom = jnp.sum(e, axis=-1, keepdims=True)                 # (H, N, 1)
    e_bf = e.astype(jnp.bfloat16)

    # ---- attn @ V, batched over heads ----
    dn_pv = (((2,), (1,)), ((0,), (0,)))
    o_un = lax.dot_general(e_bf, v3, dn_pv,
                           preferred_element_type=jnp.float32)  # (H, N, d) f32
    # Deferred normalization: an (H, N, d) multiply with an EUP-approx
    # reciprocal instead of an (H, N, N) divide.
    o_h = (o_un * pl.reciprocal(denom, approx=True)).astype(jnp.bfloat16)

    # ---- Output projection: single long-K (K = inner) lane-dense matmul.
    # rearrange 'h n d -> n (h d)' via a minor-dim concat, then contract the
    # full inner dim against W_out with head accumulation inside the MXU.
    o_cat = jnp.concatenate([o_h[h] for h in range(heads)], axis=-1)  # (N, inner)
    y = jnp.dot(o_cat, wout_ref[...], preferred_element_type=jnp.float32)
    o_ref[...] = y + bout_ref[...]                              # (N, D) f32


def attention_pallas(x, gamma, beta, w_qkv, w_out, b_out, *, heads, dim_head):
    B, N, D = x.shape
    inner = heads * dim_head
    assert w_qkv.shape == (D, 3 * inner) and w_out.shape == (inner, D)

    scale = float(dim_head) ** -0.5
    # Host-side weight plumbing: fold the softmax scale into the Q columns of
    # the fused QKV weight; keep both weights lane-dense ((D, 3*inner) and
    # (inner, D)) and cast to bf16 to halve weight DMA bytes.  MXU accumulation
    # stays f32, so accuracy matches the previous bf16-operand path.
    w_qkv_f = jnp.concatenate(
        [w_qkv[:, :inner] * scale, w_qkv[:, inner:]], axis=1
    ).astype(jnp.bfloat16)
    w_out_bf = w_out.astype(jnp.bfloat16)

    kernel = functools.partial(attention_kernel, heads=heads,
                               dim_head=dim_head, eps=1e-5)

    # Advisory cost hint so XLA schedules around the custom call.
    flops = 2 * B * (N * D * 3 * inner               # fused QKV projection
                     + 2 * heads * N * N * dim_head  # scores + attn@V
                     + N * inner * D)                # output projection
    transcendentals = B * (heads * N * N + N)        # exp + rsqrt
    bytes_accessed = int(2 * B * N * D * 4           # x in + out
                         + w_qkv_f.size * 2 + w_out_bf.size * 2
                         + 3 * D * 4)                # gamma, beta, b_out

    return pl.pallas_call(
        kernel,
        out_shape=jax.ShapeDtypeStruct((B, N, D), jnp.float32),
        grid_spec=pltpu.PrefetchScalarGridSpec(
            num_scalar_prefetch=0,
            grid=(B,),
            in_specs=[
                pl.BlockSpec((pl.Squeezed(), N, D), lambda b: (b, 0, 0)),  # x
                pl.BlockSpec((1, D), lambda b: (0, 0)),                    # LN gamma
                pl.BlockSpec((1, D), lambda b: (0, 0)),                    # LN beta
                pl.BlockSpec((D, 3 * inner), lambda b: (0, 0)),            # W_qkv
                pl.BlockSpec((inner, D), lambda b: (0, 0)),                # W_out
                pl.BlockSpec((1, D), lambda b: (0, 0)),                    # b_out
            ],
            out_specs=pl.BlockSpec((pl.Squeezed(), N, D), lambda b: (b, 0, 0)),
        ),
        compiler_params=pltpu.CompilerParams(
            dimension_semantics=("parallel",),
        ),
        cost_estimate=pl.CostEstimate(flops=flops,
                                      transcendentals=transcendentals,
                                      bytes_accessed=bytes_accessed),
    )(x, gamma.reshape(1, D), beta.reshape(1, D), w_qkv_f, w_out_bf,
      b_out.reshape(1, D))


def attention_reference(x, gamma, beta, w_qkv, w_out, b_out, *, heads, dim_head):
    """Plain-JAX f32 reference mirroring the PyTorch forward pass."""
    B, N, D = x.shape
    inner = heads * dim_head
    mu = jnp.mean(x, axis=-1, keepdims=True)
    var = jnp.mean((x - mu) ** 2, axis=-1, keepdims=True)
    xn = (x - mu) / jnp.sqrt(var + 1e-5) * gamma + beta
    qkv = xn @ w_qkv                                          # (B, N, 3*inner)
    q, k, v = jnp.split(qkv, 3, axis=-1)

    def split_heads(t):
        return t.reshape(B, N, heads, dim_head).transpose(0, 2, 1, 3)  # (B,H,N,d)

    q, k, v = map(split_heads, (q, k, v))
    dots = jnp.einsum("bhnd,bhmd->bhnm", q, k) * (dim_head ** -0.5)
    attn = jax.nn.softmax(dots, axis=-1)
    out = jnp.einsum("bhnm,bhmd->bhnd", attn, v)
    out = out.transpose(0, 2, 1, 3).reshape(B, N, inner)
    return out @ w_out + b_out


if __name__ == "__main__":
    B, N, DIM = 2, 8, 32
    HEADS, DIM_HEAD = 4, 8
    INNER = HEADS * DIM_HEAD

    key = jax.random.PRNGKey(0)
    kx, kg, kb, kqkv, kwo, kbo = jax.random.split(key, 6)

    x = jax.random.normal(kx, (B, N, DIM), dtype=jnp.float32)
    # Deterministic synthetic parameters (shapes per the module's __init__).
    gamma = 1.0 + 0.1 * jax.random.normal(kg, (DIM,), dtype=jnp.float32)   # LN weight
    beta = 0.1 * jax.random.normal(kb, (DIM,), dtype=jnp.float32)          # LN bias
    w_qkv = 0.05 * jax.random.normal(kqkv, (DIM, 3 * INNER), dtype=jnp.float32)
    w_out = 0.05 * jax.random.normal(kwo, (INNER, DIM), dtype=jnp.float32)
    b_out = 0.05 * jax.random.normal(kbo, (DIM,), dtype=jnp.float32)

    out = attention_pallas(x, gamma, beta, w_qkv, w_out, b_out,
                           heads=HEADS, dim_head=DIM_HEAD)
    out = jax.block_until_ready(out)

    ref = attention_reference(x, gamma, beta, w_qkv, w_out, b_out,
                              heads=HEADS, dim_head=DIM_HEAD)
    assert out.shape == (B, N, DIM)
    # Tolerance loosened vs a pure-f32 check because MXU operands are bf16
    # (accumulation and all elementwise math remain f32).
    assert jnp.allclose(out, ref, atol=2e-2, rtol=2e-2), "mismatch vs reference"

    print("KERNEL_OK")
</pallas_src>

<mosaic_0001>
module attributes {stable_mosaic.version = 11 : i64} {
  func.func @attention_kernel(%arg0: i32, %arg1: memref<1x8x32xf32, #tpu.memory_space<vmem>>, %arg2: memref<1x32xf32, #tpu.memory_space<vmem>>, %arg3: memref<1x32xf32, #tpu.memory_space<vmem>>, %arg4: memref<32x96xbf16, #tpu.memory_space<vmem>>, %arg5: memref<32x32xbf16, #tpu.memory_space<vmem>>, %arg6: memref<1x32xf32, #tpu.memory_space<vmem>>, %arg7: memref<1x8x32xf32, #tpu.memory_space<vmem>>) attributes {dimension_semantics = [#tpu.dimension_semantics<parallel>], iteration_bounds = array<i64: 2>, scalar_prefetch = 0 : i64, scratch_operands = 0 : i64, tpu.core_type = #tpu.core_type<tc>, window_params = [{transform_indices = @transform_0, window_bounds = array<i64: 1, 8, 32>}, {pipeline_mode = #tpu.pipeline_mode<synchronous>, transform_indices = @transform_1, window_bounds = array<i64: 1, 32>}, {pipeline_mode = #tpu.pipeline_mode<synchronous>, transform_indices = @transform_2, window_bounds = array<i64: 1, 32>}, {pipeline_mode = #tpu.pipeline_mode<synchronous>, transform_indices = @transform_3, window_bounds = array<i64: 32, 96>}, {pipeline_mode = #tpu.pipeline_mode<synchronous>, transform_indices = @transform_4, window_bounds = array<i64: 32, 32>}, {pipeline_mode = #tpu.pipeline_mode<synchronous>, transform_indices = @transform_5, window_bounds = array<i64: 1, 32>}, {transform_indices = @transform_6, window_bounds = array<i64: 1, 8, 32>}]} {
    %c0 = arith.constant 0 : index
    %c0_0 = arith.constant 0 : index
    %c0_1 = arith.constant 0 : index
    %0 = vector.load %arg1[%c0, %c0_0, %c0_1] : memref<1x8x32xf32, #tpu.memory_space<vmem>>, vector<1x8x32xf32>
    %1 = vector.shape_cast %0 : vector<1x8x32xf32> to vector<8x32xf32>
    %c0_2 = arith.constant 0 : index
    %c0_3 = arith.constant 0 : index
    %2 = vector.load %arg2[%c0_2, %c0_3] : memref<1x32xf32, #tpu.memory_space<vmem>>, vector<1x32xf32>
    %c0_4 = arith.constant 0 : index
    %c0_5 = arith.constant 0 : index
    %3 = vector.load %arg3[%c0_4, %c0_5] : memref<1x32xf32, #tpu.memory_space<vmem>>, vector<1x32xf32>
    %cst = arith.constant dense<0.000000e+00> : vector<8xf32>
    %4 = vector.multi_reduction <add>, %1, %cst [1] : vector<8x32xf32> to vector<8xf32>
    %5 = vector.shape_cast %4 : vector<8xf32> to vector<8x1xf32>
    %cst_6 = arith.constant 3.200000e+01 : f32
    %6 = vector.broadcast %cst_6 : f32 to vector<8x1xf32>
    %7 = arith.divf %5, %6 : vector<8x1xf32>
    %8 = vector.broadcast %7 : vector<8x1xf32> to vector<8x32xf32>
    %9 = arith.subf %1, %8 : vector<8x32xf32>
    %10 = arith.mulf %9, %9 : vector<8x32xf32>
    %cst_7 = arith.constant dense<0.000000e+00> : vector<8xf32>
    %11 = vector.multi_reduction <add>, %10, %cst_7 [1] : vector<8x32xf32> to vector<8xf32>
    %12 = vector.shape_cast %11 : vector<8xf32> to vector<8x1xf32>
    %cst_8 = arith.constant 3.200000e+01 : f32
    %13 = vector.broadcast %cst_8 : f32 to vector<8x1xf32>
    %14 = arith.divf %12, %13 : vector<8x1xf32>
    %cst_9 = arith.constant 9.99999974E-6 : f32
    %15 = vector.broadcast %cst_9 : f32 to vector<8x1xf32>
    %16 = arith.addf %14, %15 : vector<8x1xf32>
    %17 = math.rsqrt %16 : vector<8x1xf32>
    %18 = vector.broadcast %17 : vector<8x1xf32> to vector<8x32xf32>
    %19 = arith.mulf %9, %18 : vector<8x32xf32>
    %20 = vector.broadcast %2 : vector<1x32xf32> to vector<8x32xf32>
    %21 = arith.mulf %19, %20 : vector<8x32xf32>
    %22 = vector.broadcast %3 : vector<1x32xf32> to vector<8x32xf32>
    %23 = arith.addf %21, %22 : vector<8x32xf32>
    %24 = arith.truncf %23 : vector<8x32xf32> to vector<8x32xbf16>
    %c0_10 = arith.constant 0 : index
    %c0_11 = arith.constant 0 : index
    %25 = vector.load %arg4[%c0_10, %c0_11] : memref<32x96xbf16, #tpu.memory_space<vmem>>, vector<32x96xbf16>
    %cst_12 = arith.constant dense<0.000000e+00> : vector<8x96xf32>
    %26 = tpu.matmul %24, %25, %cst_12 {dimension_numbers = #tpu.dot_dimension_numbers<[1], [0], [0], [1], [0, 0, 1, 1], [], []>} : vector<8x32xbf16>, vector<32x96xbf16>, vector<8x96xf32> -> vector<8x96xf32>
    %27 = arith.truncf %26 : vector<8x96xf32> to vector<8x96xbf16>
    %28 = vector.extract_strided_slice %27 {offsets = [0, 0], sizes = [8, 8], strides = [1, 1]} : vector<8x96xbf16> to vector<8x8xbf16>
    %29 = vector.extract_strided_slice %27 {offsets = [0, 8], sizes = [8, 8], strides = [1, 1]} : vector<8x96xbf16> to vector<8x8xbf16>
    %30 = vector.extract_strided_slice %27 {offsets = [0, 16], sizes = [8, 8], strides = [1, 1]} : vector<8x96xbf16> to vector<8x8xbf16>
    %31 = vector.extract_strided_slice %27 {offsets = [0, 24], sizes = [8, 8], strides = [1, 1]} : vector<8x96xbf16> to vector<8x8xbf16>
    %32 = vector.shape_cast %28 : vector<8x8xbf16> to vector<1x8x8xbf16>
    %33 = vector.shape_cast %29 : vector<8x8xbf16> to vector<1x8x8xbf16>
    %34 = vector.shape_cast %30 : vector<8x8xbf16> to vector<1x8x8xbf16>
    %35 = vector.shape_cast %31 : vector<8x8xbf16> to vector<1x8x8xbf16>
    %36 = tpu.concatenate %32, %33, %34, %35 in 0 : vector<1x8x8xbf16>, vector<1x8x8xbf16>, vector<1x8x8xbf16>, vector<1x8x8xbf16> -> vector<4x8x8xbf16>
    %37 = vector.extract_strided_slice %27 {offsets = [0, 32], sizes = [8, 8], strides = [1, 1]} : vector<8x96xbf16> to vector<8x8xbf16>
    %38 = vector.extract_strided_slice %27 {offsets = [0, 40], sizes = [8, 8], strides = [1, 1]} : vector<8x96xbf16> to vector<8x8xbf16>
    %39 = vector.extract_strided_slice %27 {offsets = [0, 48], sizes = [8, 8], strides = [1, 1]} : vector<8x96xbf16> to vector<8x8xbf16>
    %40 = vector.extract_strided_slice %27 {offsets = [0, 56], sizes = [8, 8], strides = [1, 1]} : vector<8x96xbf16> to vector<8x8xbf16>
    %41 = vector.shape_cast %37 : vector<8x8xbf16> to vector<1x8x8xbf16>
    %42 = vector.shape_cast %38 : vector<8x8xbf16> to vector<1x8x8xbf16>
    %43 = vector.shape_cast %39 : vector<8x8xbf16> to vector<1x8x8xbf16>
    %44 = vector.shape_cast %40 : vector<8x8xbf16> to vector<1x8x8xbf16>
    %45 = tpu.concatenate %41, %42, %43, %44 in 0 : vector<1x8x8xbf16>, vector<1x8x8xbf16>, vector<1x8x8xbf16>, vector<1x8x8xbf16> -> vector<4x8x8xbf16>
    %46 = vector.extract_strided_slice %27 {offsets = [0, 64], sizes = [8, 8], strides = [1, 1]} : vector<8x96xbf16> to vector<8x8xbf16>
    %47 = vector.extract_strided_slice %27 {offsets = [0, 72], sizes = [8, 8], strides = [1, 1]} : vector<8x96xbf16> to vector<8x8xbf16>
    %48 = vector.extract_strided_slice %27 {offsets = [0, 80], sizes = [8, 8], strides = [1, 1]} : vector<8x96xbf16> to vector<8x8xbf16>
    %49 = vector.extract_strided_slice %27 {offsets = [0, 88], sizes = [8, 8], strides = [1, 1]} : vector<8x96xbf16> to vector<8x8xbf16>
    %50 = vector.shape_cast %46 : vector<8x8xbf16> to vector<1x8x8xbf16>
    %51 = vector.shape_cast %47 : vector<8x8xbf16> to vector<1x8x8xbf16>
    %52 = vector.shape_cast %48 : vector<8x8xbf16> to vector<1x8x8xbf16>
    %53 = vector.shape_cast %49 : vector<8x8xbf16> to vector<1x8x8xbf16>
    %54 = tpu.concatenate %50, %51, %52, %53 in 0 : vector<1x8x8xbf16>, vector<1x8x8xbf16>, vector<1x8x8xbf16>, vector<1x8x8xbf16> -> vector<4x8x8xbf16>
    %cst_13 = arith.constant dense<0.000000e+00> : vector<4x8x8xf32>
    %55 = tpu.matmul %36, %45, %cst_13 {dimension_numbers = #tpu.dot_dimension_numbers<[2], [2], [1], [1], [0, 0, 0, 1, 1, 1], [0], [0]>} : vector<4x8x8xbf16>, vector<4x8x8xbf16>, vector<4x8x8xf32> -> vector<4x8x8xf32>
    %cst_14 = arith.constant dense<0xFF800000> : vector<4x8xf32>
    %56 = vector.multi_reduction <maximumf>, %55, %cst_14 [2] : vector<4x8x8xf32> to vector<4x8xf32>
    %57 = vector.shape_cast %56 : vector<4x8xf32> to vector<4x8x1xf32>
    %58 = vector.broadcast %57 : vector<4x8x1xf32> to vector<4x8x8xf32>
    %59 = arith.subf %55, %58 : vector<4x8x8xf32>
    %60 = math.exp %59 : vector<4x8x8xf32>
    %cst_15 = arith.constant dense<0.000000e+00> : vector<4x8xf32>
    %61 = vector.multi_reduction <add>, %60, %cst_15 [2] : vector<4x8x8xf32> to vector<4x8xf32>
    %62 = vector.shape_cast %61 : vector<4x8xf32> to vector<4x8x1xf32>
    %63 = arith.truncf %60 : vector<4x8x8xf32> to vector<4x8x8xbf16>
    %cst_16 = arith.constant dense<0.000000e+00> : vector<4x8x8xf32>
    %64 = tpu.matmul %63, %54, %cst_16 {dimension_numbers = #tpu.dot_dimension_numbers<[2], [1], [1], [2], [0, 0, 0, 1, 1, 2], [0], [0]>} : vector<4x8x8xbf16>, vector<4x8x8xbf16>, vector<4x8x8xf32> -> vector<4x8x8xf32>
    %65 = tpu.reciprocal %62 {approx = true} : vector<4x8x1xf32> -> vector<4x8x1xf32>
    %66 = vector.broadcast %65 : vector<4x8x1xf32> to vector<4x8x8xf32>
    %67 = arith.mulf %64, %66 : vector<4x8x8xf32>
    %68 = arith.truncf %67 : vector<4x8x8xf32> to vector<4x8x8xbf16>
    %69 = vector.extract_strided_slice %68 {offsets = [0, 0, 0], sizes = [1, 8, 8], strides = [1, 1, 1]} : vector<4x8x8xbf16> to vector<1x8x8xbf16>
    %70 = vector.shape_cast %69 : vector<1x8x8xbf16> to vector<8x8xbf16>
    %71 = vector.extract_strided_slice %68 {offsets = [1, 0, 0], sizes = [1, 8, 8], strides = [1, 1, 1]} : vector<4x8x8xbf16> to vector<1x8x8xbf16>
    %72 = vector.shape_cast %71 : vector<1x8x8xbf16> to vector<8x8xbf16>
    %73 = vector.extract_strided_slice %68 {offsets = [2, 0, 0], sizes = [1, 8, 8], strides = [1, 1, 1]} : vector<4x8x8xbf16> to vector<1x8x8xbf16>
    %74 = vector.shape_cast %73 : vector<1x8x8xbf16> to vector<8x8xbf16>
    %75 = vector.extract_strided_slice %68 {offsets = [3, 0, 0], sizes = [1, 8, 8], strides = [1, 1, 1]} : vector<4x8x8xbf16> to vector<1x8x8xbf16>
    %76 = vector.shape_cast %75 : vector<1x8x8xbf16> to vector<8x8xbf16>
    %77 = tpu.concatenate %70, %72, %74, %76 in 1 : vector<8x8xbf16>, vector<8x8xbf16>, vector<8x8xbf16>, vector<8x8xbf16> -> vector<8x32xbf16>
    %c0_17 = arith.constant 0 : index
    %c0_18 = arith.constant 0 : index
    %78 = vector.load %arg5[%c0_17, %c0_18] : memref<32x32xbf16, #tpu.memory_space<vmem>>, vector<32x32xbf16>
    %cst_19 = arith.constant dense<0.000000e+00> : vector<8x32xf32>
    %79 = tpu.matmul %77, %78, %cst_19 {dimension_numbers = #tpu.dot_dimension_numbers<[1], [0], [0], [1], [0, 0, 1, 1], [], []>} : vector<8x32xbf16>, vector<32x32xbf16>, vector<8x32xf32> -> vector<8x32xf32>
    %c0_20 = arith.constant 0 : index
    %c0_21 = arith.constant 0 : index
    %80 = vector.load %arg6[%c0_20, %c0_21] : memref<1x32xf32, #tpu.memory_space<vmem>>, vector<1x32xf32>
    %81 = vector.broadcast %80 : vector<1x32xf32> to vector<8x32xf32>
    %82 = arith.addf %79, %81 : vector<8x32xf32>
    %c0_22 = arith.constant 0 : index
    %c0_23 = arith.constant 0 : index
    %c0_24 = arith.constant 0 : index
    %83 = vector.load %arg7[%c0_22, %c0_23, %c0_24] : memref<1x8x32xf32, #tpu.memory_space<vmem>>, vector<1x8x32xf32>
    %84 = vector.shape_cast %83 : vector<1x8x32xf32> to vector<8x32xf32>
    %85 = vector.shape_cast %82 : vector<8x32xf32> to vector<1x8x32xf32>
    tpu.vector_store %arg7[%c0_22, %c0_23, %c0_24], %85 {strides = array<i32>} : memref<1x8x32xf32, #tpu.memory_space<vmem>>, vector<1x8x32xf32>,
    return
  }
  func.func @transform_0(%arg0: i32) -> (i32, i32, i32) {
    %c0_i32 = arith.constant 0 : i32
    %c0_i32_0 = arith.constant 0 : i32
    %c0_i32_1 = arith.constant 0 : i32
    return %arg0, %c0_i32, %c0_i32_0 : i32, i32, i32
  }
  func.func @transform_1(%arg0: i32) -> (i32, i32) {
    %c0_i32 = arith.constant 0 : i32
    %c0_i32_0 = arith.constant 0 : i32
    %c0_i32_1 = arith.constant 0 : i32
    return %c0_i32, %c0_i32_0 : i32, i32
  }
  func.func @transform_2(%arg0: i32) -> (i32, i32) {
    %c0_i32 = arith.constant 0 : i32
    %c0_i32_0 = arith.constant 0 : i32
    %c0_i32_1 = arith.constant 0 : i32
    return %c0_i32, %c0_i32_0 : i32, i32
  }
  func.func @transform_3(%arg0: i32) -> (i32, i32) {
    %c0_i32 = arith.constant 0 : i32
    %c0_i32_0 = arith.constant 0 : i32
    %c0_i32_1 = arith.constant 0 : i32
    return %c0_i32, %c0_i32_0 : i32, i32
  }
  func.func @transform_4(%arg0: i32) -> (i32, i32) {
    %c0_i32 = arith.constant 0 : i32
    %c0_i32_0 = arith.constant 0 : i32
    %c0_i32_1 = arith.constant 0 : i32
    return %c0_i32, %c0_i32_0 : i32, i32
  }
  func.func @transform_5(%arg0: i32) -> (i32, i32) {
    %c0_i32 = arith.constant 0 : i32
    %c0_i32_0 = arith.constant 0 : i32
    %c0_i32_1 = arith.constant 0 : i32
    return %c0_i32, %c0_i32_0 : i32, i32
  }
  func.func @transform_6(%arg0: i32) -> (i32, i32, i32) {
    %c0_i32 = arith.constant 0 : i32
    %c0_i32_0 = arith.constant 0 : i32
    %c0_i32_1 = arith.constant 0 : i32
    return %arg0, %c0_i32, %c0_i32_0 : i32, i32, i32
  }
}

</mosaic_0001>

<llo_original>
// kernel: tpu_custom_call.1
$region0: #{tpu_custom_call.1}
  #allocation0 [shape = 'u32[]', space=smem, size = 0x4, offset = 0x4, fixed_abs, tag = 'smem constant byte address 0x4 - core index']
  #allocation1 [shape = 'u32[144,128]{1,0:T(1,128)}', space=vmem, size = 0x12000, scoped, tag = 'internal scratch']
  %s0 = inlined_call_operand.hbm [shape: f32[2,8,32], index: 0, kind: input, shape index: {}]
  %s1 = inlined_call_operand.vmem [shape: f32[1,32], index: 1, kind: input, shape index: {}]
  %s2 = inlined_call_operand.vmem [shape: f32[1,32], index: 2, kind: input, shape index: {}]
  %s3 = inlined_call_operand.hbm [shape: bf16[32,96], index: 3, kind: input, shape index: {}]
  %s4 = inlined_call_operand.hbm [shape: bf16[32,32], index: 4, kind: input, shape index: {}]
  %s5 = inlined_call_operand.vmem [shape: f32[1,32], index: 5, kind: input, shape index: {}]
  %s6 = inlined_call_operand.hbm [shape: f32[2,8,32], index: 6, kind: output, shape index: {}]
  %s7 = sld [smem:[#allocation0]]
  $region69: #{tpu_custom_call.1} parent=0
    _
  %s9 = ssub.s32 1, %s7
  %s10 = scalar_select 0, %s9, %s7
  $region1: #{tpu_custom_call.1} parent=0
    #allocation2 [shape = 'u8[8192]{0}', space=vmem, size = 0x2000, scoped, tag = 'input window, operand 0']
    #allocation3 [shape = 's32[2]{0}', space=sflag, size = 0x8, scoped, tag = 'scoped memory for tpu_custom_call.1']
    #allocation4 [shape = 's32[2]{0}', space=sflag, size = 0x8, scoped, tag = 'scoped memory for tpu_custom_call.1']
    #allocation5 [shape = 'u8[8192]{0}', space=vmem, size = 0x2000, scoped, tag = 'input window, operand 3, single buffered']
    #allocation6 [shape = 's32[1]{0}', space=sflag, size = 0x4, scoped, tag = 'scoped memory for tpu_custom_call.1']
    #allocation7 [shape = 'u8[8192]{0}', space=vmem, size = 0x2000, scoped, tag = 'input window, operand 4, single buffered']
    #allocation8 [shape = 'u8[8192]{0}', space=vmem, size = 0x2000, scoped, tag = 'output window, operand 0']
    %11 = vsyncpa [#allocation3], 0
    %s12 = scalar_lea.sflag [#allocation3], 1
    %13 = vsyncpa %s12, 0
    %14 = vsyncpa [#allocation6], 0
    %15 = vsyncpa [#allocation4], 0
    %s16 = scalar_lea.sflag [#allocation4], 1
    %17 = vsyncpa %s16, 0
    loop: start=0, step=1, limit=4
    $region2: #{tpu_custom_call.1} parent=1 // loop_pre_header
      _
    $region3: #{tpu_custom_call.1} parent=1 // loop_header
      %s19 = sphi 0, %s23
      %p20 = scmp.ge.s32.totalorder %s19, 4
      %s29 = sphi 0, %s31
      %s32 = sphi 0, %s29
      %s33 = sphi 0, %s32
      %s49 = sphi 0, %s33
      %s53 = sphi 0, %s53
      %s55 = sphi 0, %s53
      %s56 = sphi 0, %s55
      %s70 = sphi 0, %s56
      %s74 = sphi 0, %s74
      %s76 = sphi 0, %s74
      %s77 = sphi 0, %s76
      %s91 = sphi 0, %s77
      %s95 = sphi 0, %s95
      %s97 = sphi 0, %s95
      %s98 = sphi 0, %s97
      %s112 = sphi 0, %s98
      %s116 = sphi 0, %s116
      %s118 = sphi 0, %s116
      %s119 = sphi 0, %s118
      %s133 = sphi 0, %s119
      %s137 = sphi 0, %s137
      %s139 = sphi 0, %s137
      %s140 = sphi 0, %s139
      %s154 = sphi 0, %s140
      %s160 = sphi 0, %s162
      %s163 = sphi 0, %s160
      %s164 = sphi 0, %s163
      %s180 = sphi 0, %s164
    $region4: #{tpu_custom_call.1} parent=1 // loop_header_branch
      %22 = sbr.rel (%p20) target = $region8
    $region5: #{tpu_custom_call.1} parent=1 // loop_body
      %s24 = ssub.s32 %s19, 1
      %s25 = ssub.s32 %s19, 2
      %s26 = sadd.s32 %s19, 1
      %s27 = ssub.s32 %s19, %s26
      %p28 = scmp.eq.s32.totalorder %s27, 0
      %s30 = sadd.s32 %s29, 1
      %s31 = scalar_select %p28, %s29, %s30
      %p34 = pneg %p28
      %p35 = scmp.eq.s32.totalorder %s19, 1
      %p36 = por %p34, %p35
      %p37 = scmp.ne.s32.totalorder %s29, %s32
      %p38 = scmp.eq.s32.totalorder %s19, 0
      %p39 = por %p37, %p38
      %p40 = scmp.ne.s32.totalorder %s29, %s32
      %p41 = scmp.eq.s32.totalorder %s24, 1
      %p42 = por %p40, %p41
      %p43 = scmp.ne.s32.totalorder %s32, %s33
      %p44 = scmp.eq.s32.totalorder %s24, 0
      %p45 = por %p43, %p44
      %p46 = scmp.ne.s32.totalorder %s32, %s33
      %p47 = scmp.eq.s32.totalorder %s25, 1
      %p48 = por %p46, %p47
      %p50 = scmp.ne.s32.totalorder %s33, %s49
      %p51 = scmp.eq.s32.totalorder %s25, 0
      %p52 = por %p50, %p51
      %s54 = sadd.s32 %s53, 1
      %p57 = scmp.eq.s32.totalorder %s19, 1
      %p58 = scmp.ne.s32.totalorder %s53, %s55
      %p59 = scmp.eq.s32.totalorder %s19, 0
      %p60 = por %p58, %p59
      %p61 = scmp.ne.s32.totalorder %s53, %s55
      %p62 = scmp.eq.s32.totalorder %s24, 1
      %p63 = por %p61, %p62
      %p64 = scmp.ne.s32.totalorder %s55, %s56
      %p65 = scmp.eq.s32.totalorder %s24, 0
      %p66 = por %p64, %p65
      %p67 = scmp.ne.s32.totalorder %s55, %s56
      %p68 = scmp.eq.s32.totalorder %s25, 1
      %p69 = por %p67, %p68
      %p71 = scmp.ne.s32.totalorder %s56, %s70
      %p72 = scmp.eq.s32.totalorder %s25, 0
      %p73 = por %p71, %p72
      %s75 = sadd.s32 %s74, 1
      %p78 = scmp.eq.s32.totalorder %s19, 1
      %p79 = scmp.ne.s32.totalorder %s74, %s76
      %p80 = scmp.eq.s32.totalorder %s19, 0
      %p81 = por %p79, %p80
      %p82 = scmp.ne.s32.totalorder %s74, %s76
      %p83 = scmp.eq.s32.totalorder %s24, 1
      %p84 = por %p82, %p83
      %p85 = scmp.ne.s32.totalorder %s76, %s77
      %p86 = scmp.eq.s32.totalorder %s24, 0
      %p87 = por %p85, %p86
      %p88 = scmp.ne.s32.totalorder %s76, %s77
      %p89 = scmp.eq.s32.totalorder %s25, 1
      %p90 = por %p88, %p89
      %p92 = scmp.ne.s32.totalorder %s77, %s91
      %p93 = scmp.eq.s32.totalorder %s25, 0
      %p94 = por %p92, %p93
      %s96 = sadd.s32 %s95, 1
      %p99 = scmp.eq.s32.totalorder %s19, 1
      %p100 = scmp.ne.s32.totalorder %s95, %s97
      %p101 = scmp.eq.s32.totalorder %s19, 0
      %p102 = por %p100, %p101
      %p103 = scmp.ne.s32.totalorder %s95, %s97
      %p104 = scmp.eq.s32.totalorder %s24, 1
      %p105 = por %p103, %p104
      %p106 = scmp.ne.s32.totalorder %s97, %s98
      %p107 = scmp.eq.s32.totalorder %s24, 0
      %p108 = por %p106, %p107
      %p109 = scmp.ne.s32.totalorder %s97, %s98
      %p110 = scmp.eq.s32.totalorder %s25, 1
      %p111 = por %p109, %p110
      %p113 = scmp.ne.s32.totalorder %s98, %s112
      %p114 = scmp.eq.s32.totalorder %s25, 0
      %p115 = por %p113, %p114
      %s117 = sadd.s32 %s116, 1
      %p120 = scmp.eq.s32.totalorder %s19, 1
      %p121 = scmp.ne.s32.totalorder %s116, %s118
      %p122 = scmp.eq.s32.totalorder %s19, 0
      %p123 = por %p121, %p122
      %p124 = scmp.ne.s32.totalorder %s116, %s118
      %p125 = scmp.eq.s32.totalorder %s24, 1
      %p126 = por %p124, %p125
      %p127 = scmp.ne.s32.totalorder %s118, %s119
      %p128 = scmp.eq.s32.totalorder %s24, 0
      %p129 = por %p127, %p128
      %p130 = scmp.ne.s32.totalorder %s118, %s119
      %p131 = scmp.eq.s32.totalorder %s25, 1
      %p132 = por %p130, %p131
      %p134 = scmp.ne.s32.totalorder %s119, %s133
      %p135 = scmp.eq.s32.totalorder %s25, 0
      %p136 = por %p134, %p135
      %s138 = sadd.s32 %s137, 1
      %p141 = scmp.eq.s32.totalorder %s19, 1
      %p142 = scmp.ne.s32.totalorder %s137, %s139
      %p143 = scmp.eq.s32.totalorder %s19, 0
      %p144 = por %p142, %p143
      %p145 = scmp.ne.s32.totalorder %s137, %s139
      %p146 = scmp.eq.s32.totalorder %s24, 1
      %p147 = por %p145, %p146
      %p148 = scmp.ne.s32.totalorder %s139, %s140
      %p149 = scmp.eq.s32.totalorder %s24, 0
      %p150 = por %p148, %p149
      %p151 = scmp.ne.s32.totalorder %s139, %s140
      %p152 = scmp.eq.s32.totalorder %s25, 1
      %p153 = por %p151, %p152
      %p155 = scmp.ne.s32.totalorder %s140, %s154
      %p156 = scmp.eq.s32.totalorder %s25, 0
      %p157 = por %p155, %p156
      %s158 = ssub.s32 %s19, %s26
      %p159 = scmp.eq.s32.totalorder %s158, 0
      %s161 = sadd.s32 %s160, 1
      %s162 = scalar_select %p159, %s160, %s161
      %p165 = pneg %p159
      %p166 = scmp.eq.s32.totalorder %s19, 1
      %p167 = por %p165, %p166
      %p168 = scmp.ne.s32.totalorder %s160, %s163
      %p169 = scmp.eq.s32.totalorder %s19, 0
      %p170 = por %p168, %p169
      %p171 = scmp.ne.s32.totalorder %s160, %s163
      %p172 = scmp.eq.s32.totalorder %s24, 1
      %p173 = por %p171, %p172
      %p174 = scmp.ne.s32.totalorder %s163, %s164
      %p175 = scmp.eq.s32.totalorder %s24, 0
      %p176 = por %p174, %p175
      %p177 = scmp.ne.s32.totalorder %s163, %s164
      %p178 = scmp.eq.s32.totalorder %s25, 1
      %p179 = por %p177, %p178
      %p181 = scmp.ne.s32.totalorder %s164, %s180
      %p182 = scmp.eq.s32.totalorder %s25, 0
      %p183 = por %p181, %p182
      %p184 = scmp.le.s32.totalorder 1, %s19
      %p185 = scmp.lt.s32.totalorder %s19, 3
      %p186 = pnand %p184, %p185
      %p187 = pneg %p186
      // Predicated region
      $region9: #{tpu_custom_call.1} parent=5 // pred_check
        _
      $region10: #{tpu_custom_call.1} parent=5 // pred_check_branch
        %189 = sbr.rel (%p186) target = $region12
      $region11: #{tpu_custom_call.1} parent=5 // pred_region
        %s190 = ssub.s32 %s19, 1
        // Predicated region
        $region13: #{tpu_custom_call.1} parent=11 // pred_check
          %p191 = pneg %p66
        $region14: #{tpu_custom_call.1} parent=11 // pred_check_branch
          %193 = sbr.rel (%p191) target = $region16
        $region15: #{tpu_custom_call.1} parent=11 // pred_region
          _
        $region16: #{tpu_custom_call.1} parent=11 // pred_fallthru
          _
        // Predicated region
        $region17: #{tpu_custom_call.1} parent=11 // pred_check
          %p194 = pneg %p87
        $region18: #{tpu_custom_call.1} parent=11 // pred_check_branch
          %196 = sbr.rel (%p194) target = $region20
        $region19: #{tpu_custom_call.1} parent=11 // pred_region
          _
        $region20: #{tpu_custom_call.1} parent=11 // pred_fallthru
          _
        // Predicated region
        $region21: #{tpu_custom_call.1} parent=11 // pred_check
          %p197 = pneg %p108
        $region22: #{tpu_custom_call.1} parent=11 // pred_check_branch
          %199 = sbr.rel (%p197) target = $region24
        $region23: #{tpu_custom_call.1} parent=11 // pred_region
          %s201 = ssub.s32 256, 256
          %202 = vsyncadd [#allocation6], %s201
          %s203 = sshll.u32 [#allocation5], 4
          %s204 = int_to_ptr.vmem [resolvable:$true] %s203
          %209 = dma.hbm_to_vmem [thread:$0]  %s3, 256, %s204, [#allocation6], 64, 64, 4
        $region24: #{tpu_custom_call.1} parent=11 // pred_fallthru
          _
        // Predicated region
        $region25: #{tpu_custom_call.1} parent=11 // pred_check
          %p210 = pneg %p129
        $region26: #{tpu_custom_call.1} parent=11 // pred_check_branch
          %212 = sbr.rel (%p210) target = $region28
        $region27: #{tpu_custom_call.1} parent=11 // pred_region
          %s214 = ssub.s32 256, 256
          %215 = vsyncadd [#allocation6], %s214
          %s216 = sshll.u32 [#allocation7], 4
          %s217 = int_to_ptr.vmem [resolvable:$true] %s216
          %222 = dma.hbm_to_vmem [thread:$0]  %s4, 256, %s217, [#allocation6], 64, 64, 4
        $region28: #{tpu_custom_call.1} parent=11 // pred_fallthru
          _
        // Predicated region
        $region29: #{tpu_custom_call.1} parent=11 // pred_check
          %p223 = pneg %p150
        $region30: #{tpu_custom_call.1} parent=11 // pred_check_branch
          %225 = sbr.rel (%p223) target = $region32
        $region31: #{tpu_custom_call.1} parent=11 // pred_region
          _
        $region32: #{tpu_custom_call.1} parent=11 // pred_fallthru
          _
      $region12: #{tpu_custom_call.1} parent=5 // pred_fallthru
        _
      %p226 = scmp.lt.s32.totalorder %s19, 2
      // Predicated region
      $region33: #{tpu_custom_call.1} parent=5 // pred_check
        %p227 = pneg %p226
      $region34: #{tpu_custom_call.1} parent=5 // pred_check_branch
        %229 = sbr.rel (%p227) target = $region36
      $region35: #{tpu_custom_call.1} parent=5 // pred_region
        // Predicated region
        $region37: #{tpu_custom_call.1} parent=35 // pred_check
          %p230 = pneg %p39
        $region38: #{tpu_custom_call.1} parent=35 // pred_check_branch
          %232 = sbr.rel (%p230) target = $region40
        $region39: #{tpu_custom_call.1} parent=35 // pred_region
          %s233 = sand.u32 %s29, 1
          %s234 = scalar_lea.sflag [#allocation3], %s233
          %s235 = sand.u32 %s29, 1
          %s236 = smul.addr %s235, 8
          %s237 = scalar_lea.vmem [#allocation2], %s236
          %s239 = ssub.s32 128, 128
          %240 = vsyncadd %s234, %s239
          %s241 = smul.addr %s19, 128
          %s242 = scalar_lea.hbm %s0, %s241
          %s244 = sshll.u32 %s237, 4
          %s245 = int_to_ptr.vmem [resolvable:$true] %s244
          %247 = dma.hbm_to_vmem [thread:$0]  %s242, 128, %s245, %s234
        $region40: #{tpu_custom_call.1} parent=35 // pred_fallthru
          _
      $region36: #{tpu_custom_call.1} parent=5 // pred_fallthru
        _
      %p248 = scmp.le.s32.totalorder 1, %s19
      %p249 = scmp.lt.s32.totalorder %s19, 3
      %p250 = pnand %p248, %p249
      %p251 = pneg %p250
      // Predicated region
      $region41: #{tpu_custom_call.1} parent=5 // pred_check
        _
      $region42: #{tpu_custom_call.1} parent=5 // pred_check_branch
        %253 = sbr.rel (%p250) target = $region44
      $region43: #{tpu_custom_call.1} parent=5 // pred_region
        %s254 = ssub.s32 %s19, 1
        %s255 = sand.u32 %s32, 1
        %s256 = scalar_lea.sflag [#allocation3], %s255
        %s257 = sand.u32 %s32, 1
        %s258 = smul.addr %s257, 8
        %s259 = scalar_lea.vmem [#allocation2], %s258
        // Predicated region
        $region45: #{tpu_custom_call.1} parent=43 // pred_check
          %p260 = pneg %p45
        $region46: #{tpu_custom_call.1} parent=43 // pred_check_branch
          %262 = sbr.rel (%p260) target = $region48
        $region47: #{tpu_custom_call.1} parent=43 // pred_region
          %263 = dma.done %s256, 128
        $region48: #{tpu_custom_call.1} parent=43 // pred_fallthru
          _
        // Predicated region
        $region49: #{tpu_custom_call.1} parent=43 // pred_check
          %p264 = pneg %p108
        $region50: #{tpu_custom_call.1} parent=43 // pred_check_branch
          %266 = sbr.rel (%p264) target = $region52
        $region51: #{tpu_custom_call.1} parent=43 // pred_region
          %267 = dma.done [#allocation6], 256
        $region52: #{tpu_custom_call.1} parent=43 // pred_fallthru
          _
        // Predicated region
        $region53: #{tpu_custom_call.1} parent=43 // pred_check
          %p268 = pneg %p129
        $region54: #{tpu_custom_call.1} parent=43 // pred_check_branch
          %270 = sbr.rel (%p268) target = $region56
        $region55: #{tpu_custom_call.1} parent=43 // pred_region
          %271 = dma.done [#allocation6], 256
        $region56: #{tpu_custom_call.1} parent=43 // pred_fallthru
          _
        %s272 = sand.u32 %s32, 1
        %s273 = scalar_lea.sflag [#allocation3], %s272
        %s274 = sand.u32 %s32, 1
        %s275 = smul.addr %s274, 8
        %s276 = scalar_lea.vmem [#allocation2], %s275
        %p277 = pneg %p45
        %p278 = pneg %p42
        %p279 = pneg %p66
        %p280 = pneg %p63
        %p281 = pneg %p87
        %p282 = pneg %p84
        %p283 = pneg %p108
        %p284 = pneg %p105
        %p285 = pneg %p129
        %p286 = pneg %p126
        %p287 = pneg %p150
        %p288 = pneg %p147
        %p289 = pneg %p176
        %p290 = pneg %p173
        %s291 = sand.u32 %s163, 1
        %s292 = scalar_lea.sflag [#allocation4], %s291
        %s293 = sand.u32 %s163, 1
        %s294 = smul.addr %s293, 8
        %s295 = scalar_lea.vmem [#allocation8], %s294
        %v297 = vld [vmem:[%s259] sm:$0xff]
        %v298 = vld [vmem:[%s1] sm:$0x1]
        %v299 = vld [vmem:[%s2] sm:$0x1]
        %vm300 = vcmask 261120
        %v301 = vsel %vm300, %v297, 0.0
        %302 = vadd.xlane.f32.xlu0 %v301
        %v303 = vpop.xlane.xlu0 %302
        %v304 = vrcp.pop 32.0
        %v305 = vmul.f32 %v303, %v304
        %v306 = vsub.f32 %v297, %v305
        %v307 = vmul.f32 %v306, %v306
        %v308 = vsel %vm300, %v307, 0.0
        %309 = vadd.xlane.f32.xlu0 %v308
        %v310 = vpop.xlane.xlu0 %309
        %v311 = vmul.f32 %v310, %v304
        %v312 = vadd.f32 %v311, 1e-05
        %v313 = vrsqrt.pop %v312
        %v314 = vmul.f32 %v306, %v313
        %v316 = vlaneseq
        %v317 = vshrl.u32 %v316, 7
        %v318 = vsub.s32 0, %v317
        %v319 = vrot.slane %v298, %v318
        %v321 = vmul.f32 %v314, %v319
        %v323 = vlaneseq
        %v324 = vshrl.u32 %v323, 7
        %v325 = vsub.s32 0, %v324
        %v326 = vrot.slane %v299, %v325
        %v328 = vadd.f32 %v321, %v326
        %v329 = vpack.c.bf16 %v328, %v328
        %v330 = vld [vmem:[#allocation5] sm:$0xf]
        %v331 = vld [vmem:[#allocation5 + $0x4] sm:$0xf]
        %v332 = vld [vmem:[#allocation5 + $0x8] sm:$0xf]
        %v333 = vld [vmem:[#allocation5 + $0xc] sm:$0xf]
        %v338 = vunpack.c.l.b16 %v330
        %v339 = vunpack.c.l.b16 %v331
        %v340 = vunpack.c.l.b16 %v332
        %v341 = vunpack.c.l.b16 %v333
        %v342 = vpack.c.b16 %v339, %v338
        %v343 = vpack.c.b16 %v341, %v340
        %v347 = vsel %vm300, %v329, 0
        %349 = vmatprep.subr.bf16.mxu0 0
        %350 = vmatpush1.bf16.msra.mxu0 %v342
        %351 = vmatprep.subr.bf16.mxu0 0
        %352 = vmatpush1.bf16.msra.mxu0 %v343
        %353 = vmatprep.subr.bf16.mxu0 0
        %354 = vmatpush1.bf16.msra.mxu0 0
        %355 = vmatprep.subr.bf16.mxu0 0
        %356 = vmatpush1.bf16.msra.mxu0 0
        %357 = vmatprep.subr.bf16.mxu0 0
        %358 = vmatpush1.bf16.msra.mxu0 0
        %359 = vmatprep.subr.bf16.mxu0 0
        %360 = vmatpush1.bf16.msra.mxu0 0
        %361 = vmatprep.subr.bf16.mxu0 0
        %362 = vmatpush1.bf16.msra.mxu0 0
        %363 = vmatprep.subr.bf16.mxu0 0
        %364 = vmatpush1.bf16.msra.mxu0 0
        %365 = vmatprep.subr.bf16.mxu0 0
        %366 = vmatpush1.bf16.msra.mxu0 0
        %367 = vmatprep.subr.bf16.mxu0 0
        %368 = vmatpush1.bf16.msra.mxu0 0
        %369 = vmatprep.subr.bf16.mxu0 0
        %370 = vmatpush1.bf16.msra.mxu0 0
        %371 = vmatprep.subr.bf16.mxu0 0
        %372 = vmatpush1.bf16.msra.mxu0 0
        %373 = vmatprep.subr.bf16.mxu0 0
        %374 = vmatpush1.bf16.msra.mxu0 0
        %375 = vmatprep.subr.bf16.mxu0 0
        %376 = vmatpush1.bf16.msra.mxu0 0
        %377 = vmatprep.subr.bf16.mxu0 0
        %378 = vmatpush1.bf16.msra.mxu0 0
        %379 = vmatprep.subr.bf16.mxu0 0
        %380 = vmatpush1.bf16.msra.mxu0 0
        %381 = vmatprep.mubr.bf16.mxu0 0
        %382 = vmatmul.mubr.bf16.gmra.mrb[0].mxu0 %v347
        %v383 = vpop.f32.mrb[0].mxu0
        %v384 = vadd.f32 0.0, %v383
        %v385 = vpop.f32.mrb[0].mxu0
        %v386 = vpop.f32.mrb[0].mxu0
        %v387 = vpop.f32.mrb[0].mxu0
        %388 = vdwg.mxu0
        %v389 = vpack.c.bf16 %v384, %v384
        %391 = vrot.lane.b32.xlu0 %v389, 120
        %v392 = vpop.permute.xlu0 %391
        %393 = vrot.lane.b32.xlu0 %v389, 112
        %v394 = vpop.permute.xlu0 %393
        %395 = vrot.lane.b32.xlu0 %v389, 104
        %v396 = vpop.permute.xlu0 %395
        %397 = vrot.lane.b32.xlu0 %v389, 96
        %v398 = vpop.permute.xlu0 %397
        %vm399 = vcmask 64512
        %v401 = vsel %vm399, %v389, 0
        %v404 = vsel %vm399, %v398, 0
        %406 = vmatprep.subr.bf16.mxu0 0
        %407 = vmatpush1.bf16.xpose.msra.mxu0 %v404
        %408 = vmatprep.subr.bf16.mxu0 0
        %409 = vmatpush1.bf16.xpose.msra.mxu0 0
        %410 = vmatprep.subr.bf16.mxu0 0
        %411 = vmatpush1.bf16.xpose.msra.mxu0 0
        %412 = vmatprep.subr.bf16.mxu0 0
        %413 = vmatpush1.bf16.xpose.msra.mxu0 0
        %414 = vmatprep.subr.bf16.mxu0 0
        %415 = vmatpush1.bf16.xpose.msra.mxu0 0
        %416 = vmatprep.subr.bf16.mxu0 0
        %417 = vmatpush1.bf16.xpose.msra.mxu0 0
        %418 = vmatprep.subr.bf16.mxu0 0
        %419 = vmatpush1.bf16.xpose.msra.mxu0 0
        %420 = vmatprep.subr.bf16.mxu0 0
        %421 = vmatpush1.bf16.xpose.msra.mxu0 0
        %422 = vmatprep.subr.bf16.mxu0 0
        %423 = vmatpush1.bf16.xpose.msra.mxu0 0
        %424 = vmatprep.subr.bf16.mxu0 0
        %425 = vmatpush1.bf16.xpose.msra.mxu0 0
        %426 = vmatprep.subr.bf16.mxu0 0
        %427 = vmatpush1.bf16.xpose.msra.mxu0 0
        %428 = vmatprep.subr.bf16.mxu0 0
        %429 = vmatpush1.bf16.xpose.msra.mxu0 0
        %430 = vmatprep.subr.bf16.mxu0 0
        %431 = vmatpush1.bf16.xpose.msra.mxu0 0
        %432 = vmatprep.subr.bf16.mxu0 0
        %433 = vmatpush1.bf16.xpose.msra.mxu0 0
        %434 = vmatprep.subr.bf16.mxu0 0
        %435 = vmatpush1.bf16.xpose.msra.mxu0 0
        %436 = vmatprep.subr.bf16.mxu0 0
        %437 = vmatpush1.bf16.xpose.msra.mxu0 0
        %438 = vmatprep.mubr.bf16.mxu0 0
        %439 = vmatmul.mubr.bf16.gmra.mrb[0].mxu0 %v401
        %v440 = vpop.f32.mrb[0].mxu0
        %v441 = vadd.f32 0.0, %v440
        %v442 = vpop.f32.mrb[0].mxu0
        %v443 = vpop.f32.mrb[0].mxu0
        %v444 = vpop.f32.mrb[0].mxu0
        %445 = vdwg.mxu0
        %446 = vrot.lane.b32.xlu0 %v392, 96
        %v447 = vpop.permute.xlu0 %446
        %v449 = vsel %vm399, %v392, 0
        %v452 = vsel %vm399, %v447, 0
        %454 = vmatprep.subr.bf16.mxu0 0
        %455 = vmatpush1.bf16.xpose.msra.mxu0 %v452
        %456 = vmatprep.subr.bf16.mxu0 0
        %457 = vmatpush1.bf16.xpose.msra.mxu0 0
        %458 = vmatprep.subr.bf16.mxu0 0
        %459 = vmatpush1.bf16.xpose.msra.mxu0 0
        %460 = vmatprep.subr.bf16.mxu0 0
        %461 = vmatpush1.bf16.xpose.msra.mxu0 0
        %462 = vmatprep.subr.bf16.mxu0 0
        %463 = vmatpush1.bf16.xpose.msra.mxu0 0
        %464 = vmatprep.subr.bf16.mxu0 0
        %465 = vmatpush1.bf16.xpose.msra.mxu0 0
        %466 = vmatprep.subr.bf16.mxu0 0
        %467 = vmatpush1.bf16.xpose.msra.mxu0 0
        %468 = vmatprep.subr.bf16.mxu0 0
        %469 = vmatpush1.bf16.xpose.msra.mxu0 0
        %470 = vmatprep.subr.bf16.mxu0 0
        %471 = vmatpush1.bf16.xpose.msra.mxu0 0
        %472 = vmatprep.subr.bf16.mxu0 0
        %473 = vmatpush1.bf16.xpose.msra.mxu0 0
        %474 = vmatprep.subr.bf16.mxu0 0
        %475 = vmatpush1.bf16.xpose.msra.mxu0 0
        %476 = vmatprep.subr.bf16.mxu0 0
        %477 = vmatpush1.bf16.xpose.msra.mxu0 0
        %478 = vmatprep.subr.bf16.mxu0 0
        %479 = vmatpush1.bf16.xpose.msra.mxu0 0
        %480 = vmatprep.subr.bf16.mxu0 0
        %481 = vmatpush1.bf16.xpose.msra.mxu0 0
        %482 = vmatprep.subr.bf16.mxu0 0
        %483 = vmatpush1.bf16.xpose.msra.mxu0 0
        %484 = vmatprep.subr.bf16.mxu0 0
        %485 = vmatpush1.bf16.xpose.msra.mxu0 0
        %486 = vmatprep.mubr.bf16.mxu0 0
        %487 = vmatmul.mubr.bf16.gmra.mrb[0].mxu0 %v449
        %v488 = vpop.f32.mrb[0].mxu0
        %v489 = vadd.f32 0.0, %v488
        %v490 = vpop.f32.mrb[0].mxu0
        %v491 = vpop.f32.mrb[0].mxu0
        %v492 = vpop.f32.mrb[0].mxu0
        %493 = vdwg.mxu0
        %494 = vrot.lane.b32.xlu0 %v394, 96
        %v495 = vpop.permute.xlu0 %494
        %v497 = vsel %vm399, %v394, 0
        %v500 = vsel %vm399, %v495, 0
        %502 = vmatprep.subr.bf16.mxu0 0
        %503 = vmatpush1.bf16.xpose.msra.mxu0 %v500
        %504 = vmatprep.subr.bf16.mxu0 0
        %505 = vmatpush1.bf16.xpose.msra.mxu0 0
        %506 = vmatprep.subr.bf16.mxu0 0
        %507 = vmatpush1.bf16.xpose.msra.mxu0 0
        %508 = vmatprep.subr.bf16.mxu0 0
        %509 = vmatpush1.bf16.xpose.msra.mxu0 0
        %510 = vmatprep.subr.bf16.mxu0 0
        %511 = vmatpush1.bf16.xpose.msra.mxu0 0
        %512 = vmatprep.subr.bf16.mxu0 0
        %513 = vmatpush1.bf16.xpose.msra.mxu0 0
        %514 = vmatprep.subr.bf16.mxu0 0
        %515 = vmatpush1.bf16.xpose.msra.mxu0 0
        %516 = vmatprep.subr.bf16.mxu0 0
        %517 = vmatpush1.bf16.xpose.msra.mxu0 0
        %518 = vmatprep.subr.bf16.mxu0 0
        %519 = vmatpush1.bf16.xpose.msra.mxu0 0
        %520 = vmatprep.subr.bf16.mxu0 0
        %521 = vmatpush1.bf16.xpose.msra.mxu0 0
        %522 = vmatprep.subr.bf16.mxu0 0
        %523 = vmatpush1.bf16.xpose.msra.mxu0 0
        %524 = vmatprep.subr.bf16.mxu0 0
        %525 = vmatpush1.bf16.xpose.msra.mxu0 0
        %526 = vmatprep.subr.bf16.mxu0 0
        %527 = vmatpush1.bf16.xpose.msra.mxu0 0
        %528 = vmatprep.subr.bf16.mxu0 0
        %529 = vmatpush1.bf16.xpose.msra.mxu0 0
        %530 = vmatprep.subr.bf16.mxu0 0
        %531 = vmatpush1.bf16.xpose.msra.mxu0 0
        %532 = vmatprep.subr.bf16.mxu0 0
        %533 = vmatpush1.bf16.xpose.msra.mxu0 0
        %534 = vmatprep.mubr.bf16.mxu0 0
        %535 = vmatmul.mubr.bf16.gmra.mrb[0].mxu0 %v497
        %v536 = vpop.f32.mrb[0].mxu0
        %v537 = vadd.f32 0.0, %v536
        %v538 = vpop.f32.mrb[0].mxu0
        %v539 = vpop.f32.mrb[0].mxu0
        %v540 = vpop.f32.mrb[0].mxu0
        %541 = vdwg.mxu0
        %542 = vrot.lane.b32.xlu0 %v396, 96
        %v543 = vpop.permute.xlu0 %542
        %v545 = vsel %vm399, %v396, 0
        %v548 = vsel %vm399, %v543, 0
        %550 = vmatprep.subr.bf16.mxu0 0
        %551 = vmatpush1.bf16.xpose.msra.mxu0 %v548
        %552 = vmatprep.subr.bf16.mxu0 0
        %553 = vmatpush1.bf16.xpose.msra.mxu0 0
        %554 = vmatprep.subr.bf16.mxu0 0
        %555 = vmatpush1.bf16.xpose.msra.mxu0 0
        %556 = vmatprep.subr.bf16.mxu0 0
        %557 = vmatpush1.bf16.xpose.msra.mxu0 0
        %558 = vmatprep.subr.bf16.mxu0 0
        %559 = vmatpush1.bf16.xpose.msra.mxu0 0
        %560 = vmatprep.subr.bf16.mxu0 0
        %561 = vmatpush1.bf16.xpose.msra.mxu0 0
        %562 = vmatprep.subr.bf16.mxu0 0
        %563 = vmatpush1.bf16.xpose.msra.mxu0 0
        %564 = vmatprep.subr.bf16.mxu0 0
        %565 = vmatpush1.bf16.xpose.msra.mxu0 0
        %566 = vmatprep.subr.bf16.mxu0 0
        %567 = vmatpush1.bf16.xpose.msra.mxu0 0
        %568 = vmatprep.subr.bf16.mxu0 0
        %569 = vmatpush1.bf16.xpose.msra.mxu0 0
        %570 = vmatprep.subr.bf16.mxu0 0
        %571 = vmatpush1.bf16.xpose.msra.mxu0 0
        %572 = vmatprep.subr.bf16.mxu0 0
        %573 = vmatpush1.bf16.xpose.msra.mxu0 0
        %574 = vmatprep.subr.bf16.mxu0 0
        %575 = vmatpush1.bf16.xpose.msra.mxu0 0
        %576 = vmatprep.subr.bf16.mxu0 0
        %577 = vmatpush1.bf16.xpose.msra.mxu0 0
        %578 = vmatprep.subr.bf16.mxu0 0
        %579 = vmatpush1.bf16.xpose.msra.mxu0 0
        %580 = vmatprep.subr.bf16.mxu0 0
        %581 = vmatpush1.bf16.xpose.msra.mxu0 0
        %582 = vmatprep.mubr.bf16.mxu0 0
        %583 = vmatmul.mubr.bf16.gmra.mrb[0].mxu0 %v545
        %v584 = vpop.f32.mrb[0].mxu0
        %v585 = vadd.f32 0.0, %v584
        %v586 = vpop.f32.mrb[0].mxu0
        %v587 = vpop.f32.mrb[0].mxu0
        %v588 = vpop.f32.mrb[0].mxu0
        %589 = vdwg.mxu0
        %v590 = vsel %vm399, %v441, -inf
        %591 = vmax.xlane.f32.xlu0 %v590
        %v592 = vpop.xlane.xlu0 %591
        %v593 = vsel %vm399, %v489, -inf
        %594 = vmax.xlane.f32.xlu0 %v593
        %v595 = vpop.xlane.xlu0 %594
        %v596 = vsel %vm399, %v537, -inf
        %597 = vmax.xlane.f32.xlu0 %v596
        %v598 = vpop.xlane.xlu0 %597
        %v599 = vsel %vm399, %v585, -inf
        %600 = vmax.xlane.f32.xlu0 %v599
        %v601 = vpop.xlane.xlu0 %600
        %v602 = vsub.f32 %v441, %v592
        %v603 = vsub.f32 %v489, %v595
        %v604 = vsub.f32 %v537, %v598
        %v605 = vsub.f32 %v585, %v601
        %v606 = vmul.f32 %v602, 1.442695
        %v607 = vpow.pop %v606
        %v608 = vmul.f32 %v603, 1.442695
        %v609 = vpow.pop %v608
        %v610 = vmul.f32 %v604, 1.442695
        %v611 = vpow.pop %v610
        %v612 = vmul.f32 %v605, 1.442695
        %v613 = vpow.pop %v612
        %v614 = vsel %vm399, %v607, 0.0
        %615 = vadd.xlane.f32.xlu0 %v614
        %v616 = vpop.xlane.xlu0 %615
        %v617 = vsel %vm399, %v609, 0.0
        %618 = vadd.xlane.f32.xlu0 %v617
        %v619 = vpop.xlane.xlu0 %618
        %v620 = vsel %vm399, %v611, 0.0
        %621 = vadd.xlane.f32.xlu0 %v620
        %v622 = vpop.xlane.xlu0 %621
        %v623 = vsel %vm399, %v613, 0.0
        %624 = vadd.xlane.f32.xlu0 %v623
        %v625 = vpop.xlane.xlu0 %624
        %v626 = vpack.c.bf16 %v607, %v607
        %v627 = vpack.c.bf16 %v609, %v609
        %v628 = vpack.c.bf16 %v611, %v611
        %v629 = vpack.c.bf16 %v613, %v613
        %630 = vrot.lane.b32.xlu0 %v389, 64
        %v631 = vpop.permute.xlu0 %630
        %v633 = vsel %vm399, %v626, 0
        %vm635 = vcmask 1043456
        %v637 = vsel %vm635, %v631, 0
        %639 = vmatprep.subr.bf16.mxu0 0
        %640 = vmatpush1.bf16.msra.mxu0 %v637
        %641 = vmatprep.subr.bf16.mxu0 0
        %642 = vmatpush1.bf16.msra.mxu0 0
        %643 = vmatprep.subr.bf16.mxu0 0
        %644 = vmatpush1.bf16.msra.mxu0 0
        %645 = vmatprep.subr.bf16.mxu0 0
        %646 = vmatpush1.bf16.msra.mxu0 0
        %647 = vmatprep.subr.bf16.mxu0 0
        %648 = vmatpush1.bf16.msra.mxu0 0
        %649 = vmatprep.subr.bf16.mxu0 0
        %650 = vmatpush1.bf16.msra.mxu0 0
        %651 = vmatprep.subr.bf16.mxu0 0
        %652 = vmatpush1.bf16.msra.mxu0 0
        %653 = vmatprep.subr.bf16.mxu0 0
        %654 = vmatpush1.bf16.msra.mxu0 0
        %655 = vmatprep.subr.bf16.mxu0 0
        %656 = vmatpush1.bf16.msra.mxu0 0
        %657 = vmatprep.subr.bf16.mxu0 0
        %658 = vmatpush1.bf16.msra.mxu0 0
        %659 = vmatprep.subr.bf16.mxu0 0
        %660 = vmatpush1.bf16.msra.mxu0 0
        %661 = vmatprep.subr.bf16.mxu0 0
        %662 = vmatpush1.bf16.msra.mxu0 0
        %663 = vmatprep.subr.bf16.mxu0 0
        %664 = vmatpush1.bf16.msra.mxu0 0
        %665 = vmatprep.subr.bf16.mxu0 0
        %666 = vmatpush1.bf16.msra.mxu0 0
        %667 = vmatprep.subr.bf16.mxu0 0
        %668 = vmatpush1.bf16.msra.mxu0 0
        %669 = vmatprep.subr.bf16.mxu0 0
        %670 = vmatpush1.bf16.msra.mxu0 0
        %671 = vmatprep.mubr.bf16.mxu0 0
        %672 = vmatmul.mubr.bf16.gmra.mrb[0].mxu0 %v633
        %v673 = vpop.f32.mrb[0].mxu0
        %v674 = vadd.f32 0.0, %v673
        %v675 = vpop.f32.mrb[0].mxu0
        %v676 = vpop.f32.mrb[0].mxu0
        %v677 = vpop.f32.mrb[0].mxu0
        %678 = vdwg.mxu0
        %679 = vrot.lane.b32.xlu0 %v392, 64
        %v680 = vpop.permute.xlu0 %679
        %v682 = vsel %vm399, %v627, 0
        %v685 = vsel %vm635, %v680, 0
        %687 = vmatprep.subr.bf16.mxu0 0
        %688 = vmatpush1.bf16.msra.mxu0 %v685
        %689 = vmatprep.subr.bf16.mxu0 0
        %690 = vmatpush1.bf16.msra.mxu0 0
        %691 = vmatprep.subr.bf16.mxu0 0
        %692 = vmatpush1.bf16.msra.mxu0 0
        %693 = vmatprep.subr.bf16.mxu0 0
        %694 = vmatpush1.bf16.msra.mxu0 0
        %695 = vmatprep.subr.bf16.mxu0 0
        %696 = vmatpush1.bf16.msra.mxu0 0
        %697 = vmatprep.subr.bf16.mxu0 0
        %698 = vmatpush1.bf16.msra.mxu0 0
        %699 = vmatprep.subr.bf16.mxu0 0
        %700 = vmatpush1.bf16.msra.mxu0 0
        %701 = vmatprep.subr.bf16.mxu0 0
        %702 = vmatpush1.bf16.msra.mxu0 0
        %703 = vmatprep.subr.bf16.mxu0 0
        %704 = vmatpush1.bf16.msra.mxu0 0
        %705 = vmatprep.subr.bf16.mxu0 0
        %706 = vmatpush1.bf16.msra.mxu0 0
        %707 = vmatprep.subr.bf16.mxu0 0
        %708 = vmatpush1.bf16.msra.mxu0 0
        %709 = vmatprep.subr.bf16.mxu0 0
        %710 = vmatpush1.bf16.msra.mxu0 0
        %711 = vmatprep.subr.bf16.mxu0 0
        %712 = vmatpush1.bf16.msra.mxu0 0
        %713 = vmatprep.subr.bf16.mxu0 0
        %714 = vmatpush1.bf16.msra.mxu0 0
        %715 = vmatprep.subr.bf16.mxu0 0
        %716 = vmatpush1.bf16.msra.mxu0 0
        %717 = vmatprep.subr.bf16.mxu0 0
        %718 = vmatpush1.bf16.msra.mxu0 0
        %719 = vmatprep.mubr.bf16.mxu0 0
        %720 = vmatmul.mubr.bf16.gmra.mrb[0].mxu0 %v682
        %v721 = vpop.f32.mrb[0].mxu0
        %v722 = vadd.f32 0.0, %v721
        %v723 = vpop.f32.mrb[0].mxu0
        %v724 = vpop.f32.mrb[0].mxu0
        %v725 = vpop.f32.mrb[0].mxu0
        %726 = vdwg.mxu0
        %727 = vrot.lane.b32.xlu0 %v394, 64
        %v728 = vpop.permute.xlu0 %727
        %v730 = vsel %vm399, %v628, 0
        %v733 = vsel %vm635, %v728, 0
        %735 = vmatprep.subr.bf16.mxu0 0
        %736 = vmatpush1.bf16.msra.mxu0 %v733
        %737 = vmatprep.subr.bf16.mxu0 0
        %738 = vmatpush1.bf16.msra.mxu0 0
        %739 = vmatprep.subr.bf16.mxu0 0
        %740 = vmatpush1.bf16.msra.mxu0 0
        %741 = vmatprep.subr.bf16.mxu0 0
        %742 = vmatpush1.bf16.msra.mxu0 0
        %743 = vmatprep.subr.bf16.mxu0 0
        %744 = vmatpush1.bf16.msra.mxu0 0
        %745 = vmatprep.subr.bf16.mxu0 0
        %746 = vmatpush1.bf16.msra.mxu0 0
        %747 = vmatprep.subr.bf16.mxu0 0
        %748 = vmatpush1.bf16.msra.mxu0 0
        %749 = vmatprep.subr.bf16.mxu0 0
        %750 = vmatpush1.bf16.msra.mxu0 0
        %751 = vmatprep.subr.bf16.mxu0 0
        %752 = vmatpush1.bf16.msra.mxu0 0
        %753 = vmatprep.subr.bf16.mxu0 0
        %754 = vmatpush1.bf16.msra.mxu0 0
        %755 = vmatprep.subr.bf16.mxu0 0
        %756 = vmatpush1.bf16.msra.mxu0 0
        %757 = vmatprep.subr.bf16.mxu0 0
        %758 = vmatpush1.bf16.msra.mxu0 0
        %759 = vmatprep.subr.bf16.mxu0 0
        %760 = vmatpush1.bf16.msra.mxu0 0
        %761 = vmatprep.subr.bf16.mxu0 0
        %762 = vmatpush1.bf16.msra.mxu0 0
        %763 = vmatprep.subr.bf16.mxu0 0
        %764 = vmatpush1.bf16.msra.mxu0 0
        %765 = vmatprep.subr.bf16.mxu0 0
        %766 = vmatpush1.bf16.msra.mxu0 0
        %767 = vmatprep.mubr.bf16.mxu0 0
        %768 = vmatmul.mubr.bf16.gmra.mrb[0].mxu0 %v730
        %v769 = vpop.f32.mrb[0].mxu0
        %v770 = vadd.f32 0.0, %v769
        %v771 = vpop.f32.mrb[0].mxu0
        %v772 = vpop.f32.mrb[0].mxu0
        %v773 = vpop.f32.mrb[0].mxu0
        %774 = vdwg.mxu0
        %775 = vrot.lane.b32.xlu0 %v396, 64
        %v776 = vpop.permute.xlu0 %775
        %v778 = vsel %vm399, %v629, 0
        %v781 = vsel %vm635, %v776, 0
        %783 = vmatprep.subr.bf16.mxu0 0
        %784 = vmatpush1.bf16.msra.mxu0 %v781
        %785 = vmatprep.subr.bf16.mxu0 0
        %786 = vmatpush1.bf16.msra.mxu0 0
        %787 = vmatprep.subr.bf16.mxu0 0
        %788 = vmatpush1.bf16.msra.mxu0 0
        %789 = vmatprep.subr.bf16.mxu0 0
        %790 = vmatpush1.bf16.msra.mxu0 0
        %791 = vmatprep.subr.bf16.mxu0 0
        %792 = vmatpush1.bf16.msra.mxu0 0
        %793 = vmatprep.subr.bf16.mxu0 0
        %794 = vmatpush1.bf16.msra.mxu0 0
        %795 = vmatprep.subr.bf16.mxu0 0
        %796 = vmatpush1.bf16.msra.mxu0 0
        %797 = vmatprep.subr.bf16.mxu0 0
        %798 = vmatpush1.bf16.msra.mxu0 0
        %799 = vmatprep.subr.bf16.mxu0 0
        %800 = vmatpush1.bf16.msra.mxu0 0
        %801 = vmatprep.subr.bf16.mxu0 0
        %802 = vmatpush1.bf16.msra.mxu0 0
        %803 = vmatprep.subr.bf16.mxu0 0
        %804 = vmatpush1.bf16.msra.mxu0 0
        %805 = vmatprep.subr.bf16.mxu0 0
        %806 = vmatpush1.bf16.msra.mxu0 0
        %807 = vmatprep.subr.bf16.mxu0 0
        %808 = vmatpush1.bf16.msra.mxu0 0
        %809 = vmatprep.subr.bf16.mxu0 0
        %810 = vmatpush1.bf16.msra.mxu0 0
        %811 = vmatprep.subr.bf16.mxu0 0
        %812 = vmatpush1.bf16.msra.mxu0 0
        %813 = vmatprep.subr.bf16.mxu0 0
        %814 = vmatpush1.bf16.msra.mxu0 0
        %815 = vmatprep.mubr.bf16.mxu0 0
        %816 = vmatmul.mubr.bf16.gmra.mrb[0].mxu0 %v778
        %v817 = vpop.f32.mrb[0].mxu0
        %v818 = vadd.f32 0.0, %v817
        %v819 = vpop.f32.mrb[0].mxu0
        %v820 = vpop.f32.mrb[0].mxu0
        %v821 = vpop.f32.mrb[0].mxu0
        %822 = vdwg.mxu0
        %v823 = vrcp.pop %v616
        %v824 = vrcp.pop %v619
        %v825 = vrcp.pop %v622
        %v826 = vrcp.pop %v625
        %v827 = vmul.f32 %v674, %v823
        %v828 = vmul.f32 %v722, %v824
        %v829 = vmul.f32 %v770, %v825
        %v830 = vmul.f32 %v818, %v826
        %v831 = vpack.c.bf16 %v827, %v827
        %v832 = vpack.c.bf16 %v828, %v828
        %v833 = vpack.c.bf16 %v829, %v829
        %v834 = vpack.c.bf16 %v830, %v830
        %836 = vrot.lane.b32.xlu0 %v832, 8
        %v837 = vpop.permute.xlu0 %836
        %839 = vrot.lane.b32.xlu0 %v833, 16
        %v840 = vpop.permute.xlu0 %839
        %842 = vrot.lane.b32.xlu0 %v834, 24
        %v843 = vpop.permute.xlu0 %842
        %v846 = vsel %vm399, %v831, %v837
        %vm847 = vcmask 130048
        %v849 = vsel %vm847, %v846, %v840
        %vm850 = vcmask 195584
        %v852 = vsel %vm850, %v849, %v843
        %v853 = vld [vmem:[#allocation7] sm:$0xf]
        %v854 = vld [vmem:[#allocation7 + $0x4] sm:$0xf]
        %v855 = vld [vmem:[#allocation7 + $0x8] sm:$0xf]
        %v856 = vld [vmem:[#allocation7 + $0xc] sm:$0xf]
        %v857 = vld [vmem:[%s5] sm:$0x1]
        %v859 = vlaneseq
        %v860 = vshrl.u32 %v859, 7
        %v861 = vsub.s32 0, %v860
        %v862 = vrot.slane %v857, %v861
        %v868 = vunpack.c.l.b16 %v853
        %v869 = vunpack.c.l.b16 %v854
        %v870 = vunpack.c.l.b16 %v855
        %v871 = vunpack.c.l.b16 %v856
        %v872 = vpack.c.b16 %v869, %v868
        %v873 = vpack.c.b16 %v871, %v870
        %v876 = vsel %vm300, %v852, 0
        %878 = vmatprep.subr.bf16.mxu0 0
        %879 = vmatpush1.bf16.msra.mxu0 %v872
        %880 = vmatprep.subr.bf16.mxu0 0
        %881 = vmatpush1.bf16.msra.mxu0 %v873
        %882 = vmatprep.subr.bf16.mxu0 0
        %883 = vmatpush1.bf16.msra.mxu0 0
        %884 = vmatprep.subr.bf16.mxu0 0
        %885 = vmatpush1.bf16.msra.mxu0 0
        %886 = vmatprep.subr.bf16.mxu0 0
        %887 = vmatpush1.bf16.msra.mxu0 0
        %888 = vmatprep.subr.bf16.mxu0 0
        %889 = vmatpush1.bf16.msra.mxu0 0
        %890 = vmatprep.subr.bf16.mxu0 0
        %891 = vmatpush1.bf16.msra.mxu0 0
        %892 = vmatprep.subr.bf16.mxu0 0
        %893 = vmatpush1.bf16.msra.mxu0 0
        %894 = vmatprep.subr.bf16.mxu0 0
        %895 = vmatpush1.bf16.msra.mxu0 0
        %896 = vmatprep.subr.bf16.mxu0 0
        %897 = vmatpush1.bf16.msra.mxu0 0
        %898 = vmatprep.subr.bf16.mxu0 0
        %899 = vmatpush1.bf16.msra.mxu0 0
        %900 = vmatprep.subr.bf16.mxu0 0
        %901 = vmatpush1.bf16.msra.mxu0 0
        %902 = vmatprep.subr.bf16.mxu0 0
        %903 = vmatpush1.bf16.msra.mxu0 0
        %904 = vmatprep.subr.bf16.mxu0 0
        %905 = vmatpush1.bf16.msra.mxu0 0
        %906 = vmatprep.subr.bf16.mxu0 0
        %907 = vmatpush1.bf16.msra.mxu0 0
        %908 = vmatprep.subr.bf16.mxu0 0
        %909 = vmatpush1.bf16.msra.mxu0 0
        %910 = vmatprep.mubr.bf16.mxu0 0
        %911 = vmatmul.mubr.bf16.gmra.mrb[0].mxu0 %v876
        %v912 = vpop.f32.mrb[0].mxu0
        %v913 = vadd.f32 %v862, %v912
        %v914 = vpop.f32.mrb[0].mxu0
        %v915 = vpop.f32.mrb[0].mxu0
        %v916 = vpop.f32.mrb[0].mxu0
        %917 = vdwg.mxu0
        %918 = vst.msk [vmem:[%s295] sm:$0xff] %vm300, %v913
        %s919 = sand.u32 %s163, 1
        %s920 = scalar_lea.sflag [#allocation4], %s919
        %s921 = sand.u32 %s163, 1
        %s922 = smul.addr %s921, 8
        %s923 = scalar_lea.vmem [#allocation8], %s922
        // Predicated region
        $region57: #{tpu_custom_call.1} parent=43 // pred_check
          %p924 = pneg %p173
        $region58: #{tpu_custom_call.1} parent=43 // pred_check_branch
          %926 = sbr.rel (%p924) target = $region60
        $region59: #{tpu_custom_call.1} parent=43 // pred_region
          %s928 = ssub.s32 128, 128
          %929 = vsyncadd %s920, %s928
          %s930 = smul.addr %s24, 128
          %s931 = scalar_lea.hbm %s6, %s930
          %s933 = sshll.u32 %s923, 4
          %s934 = int_to_ptr.vmem [resolvable:$true] %s933
          %936 = dma.vmem_to_hbm [thread:$0]  %s934, 128, %s931, %s920
        $region60: #{tpu_custom_call.1} parent=43 // pred_fallthru
          _
      $region44: #{tpu_custom_call.1} parent=5 // pred_fallthru
        _
      %p937 = scmp.le.s32.totalorder 2, %s19
      // Predicated region
      $region61: #{tpu_custom_call.1} parent=5 // pred_check
        %p938 = pneg %p937
      $region62: #{tpu_custom_call.1} parent=5 // pred_check_branch
        %940 = sbr.rel (%p938) target = $region64
      $region63: #{tpu_custom_call.1} parent=5 // pred_region
        %s941 = ssub.s32 %s19, 2
        // Predicated region
        $region65: #{tpu_custom_call.1} parent=63 // pred_check
          %p942 = pneg %p179
        $region66: #{tpu_custom_call.1} parent=63 // pred_check_branch
          %944 = sbr.rel (%p942) target = $region68
        $region67: #{tpu_custom_call.1} parent=63 // pred_region
          %s945 = sand.u32 %s164, 1
          %s946 = scalar_lea.sflag [#allocation4], %s945
          %s947 = sand.u32 %s164, 1
          %s948 = smul.addr %s947, 8
          %s949 = scalar_lea.vmem [#allocation8], %s948
          %950 = dma.done %s946, 128
        $region68: #{tpu_custom_call.1} parent=63 // pred_fallthru
          _
      $region64: #{tpu_custom_call.1} parent=5 // pred_fallthru
        _
    $region6: #{tpu_custom_call.1} parent=1 // loop_footer
      %s23 = sadd.s32 1, %s19
    $region7: #{tpu_custom_call.1} parent=1 // loop_footer_branch
      %18 = sbr.rel target = $region3
    $region8: #{tpu_custom_call.1} parent=1 // loop_exit
      _
    %951 = vsyncpa [#allocation3], 1
    %s952 = scalar_lea.sflag [#allocation3], 1
    %953 = vsyncpa %s952, 1
    %954 = vsyncpa [#allocation6], 1
    %955 = vsyncpa [#allocation4], 1
    %s956 = scalar_lea.sflag [#allocation4], 1
    %957 = vsyncpa %s956, 1

</llo_original>
